<compile_context>
chip_gen: v6e
topology: v6e:2x2x1
jax: 0.10.0
libtpu: 0.0.40
codegen_flags: <defaults>
</compile_context>

<pallas_src>
import functools

import jax
import jax.numpy as jnp
import numpy as np
from jax.experimental import pallas as pl
from jax.experimental.pallas import tpu as pltpu


def _num_tensorcores() -> int:
    """Best-effort TensorCores-per-chip query; defaults to 1 (v5e/v6e)."""
    try:
        info = pltpu.get_tpu_info()
        for attr in ("num_cores", "num_tensorcores", "tensorcore_count",
                     "cores_per_chip"):
            v = getattr(info, attr, None)
            if isinstance(v, int) and 1 <= v <= 8:
                return v
    except Exception:
        pass
    return 1


def _vmem_capacity_bytes() -> int:
    """Physical VMEM per core; conservative 64 MiB fallback (v7x floor)."""
    try:
        info = pltpu.get_tpu_info()
        v = getattr(info, "vmem_capacity_bytes", None)
        if isinstance(v, int) and v > 0:
            return v
    except Exception:
        pass
    return 64 * 1024 * 1024


def _tv_kernel(x_ref, w_ref, o_ref, *, shift_h, shift_w, nc, blocks_per_split):
    """Grid = (split, block-within-split).

    x_ref : (b_nc, L) input block, L = H*W (lane-dense rows).
    w_ref : (2, L) f32 per-lane weights (row 0: vertical diffs, row 1:
            horizontal diffs); validity mask, 1/count and 2*weight/N folded in.
    o_ref : (1, 8, 128) f32 output block for this split; accumulated across the
            reduction grid axis, [0, 0, 0] holds the split's partial loss.
    """
    s = pl.program_id(0)
    j = pl.program_id(1)
    b_nc = x_ref.shape[0]
    logical_block = s * blocks_per_split + j

    @pl.when(j == 0)
    def _():
        o_ref[...] = jnp.zeros_like(o_ref)

    x_raw = x_ref[...]
    # Roll on the raw dtype (halves XLU bytes for bf16/fp8 inputs), then cast.
    xh = pltpu.roll(x_raw, shift_h, axis=1)       # x[:, (p + W) % L]
    xw = pltpu.roll(x_raw, shift_w, axis=1)       # x[:, (p + 1) % L]
    x = x_raw.astype(jnp.float32)
    dh = xh.astype(jnp.float32) - x
    dw = xw.astype(jnp.float32) - x
    # Pure element-wise VPU work; weights zero the wrapped lanes.
    contrib = dh * dh * w_ref[0:1, :] + dw * dw * w_ref[1:2, :]

    # Rows of this (logical) block that actually lie inside the N*C extent.
    valid_rows = nc - logical_block * b_nc

    @pl.when(valid_rows >= b_nc)                  # common case: full block
    def _():
        o_ref[...] += jnp.sum(contrib)

    @pl.when(valid_rows < b_nc)                   # ragged last / clamped block
    def _():
        rows = jax.lax.broadcasted_iota(jnp.int32, contrib.shape, 0)
        o_ref[...] += jnp.sum(jnp.where(rows < valid_rows, contrib, 0.0))


def tv_loss(x, tv_loss_weight=1.0):
    """TVLoss.forward(x) for x of shape (N, C, H, W). Returns a scalar."""
    n, c, h, w = x.shape
    nc = n * c
    L = h * w

    count_h = c * (h - 1) * w          # _tensor_size(x[:, :, 1:, :])
    count_w = c * h * (w - 1)          # _tensor_size(x[:, :, :, 1:])
    scale = 2.0 * float(tv_loss_weight) / float(n)
    # NOTE: PyTorch yields nan/inf when h==1 or w==1; we simply drop that term.
    inv_h = scale / count_h if count_h > 0 else 0.0
    inv_w = scale / count_w if count_w > 0 else 0.0

    # Per-lane weights: validity mask of each difference position folded with
    # 1/count and the 2*weight/N scale. Computed once on host, DMA'd once
    # (constant index_map), broadcast along sublanes inside the kernel.
    lane = np.arange(L)
    wh = np.where(lane < (h - 1) * w, inv_h, 0.0)
    ww = np.where(lane % w != (w - 1), inv_w, 0.0)
    w_arr = np.stack([wh, ww]).astype(np.float32)          # (2, L)

    x2 = x.reshape(nc, L)
    elem = x2.dtype.itemsize

    # Block size along N*C: target ~12 MiB per input block (amortises the
    # ~0.35 us per-grid-step overhead, which matters most on v7x's 3.2 TB/s
    # HBM). The f32 accumulator is gone, so double-buffered inputs dominate.
    # TODO(synk): add an H-tiled (halo-row) path for single slices too large
    # to fit in VMEM (e.g. >1K-resolution f32 images).
    target_bytes = 12 * 1024 * 1024
    packing = max(1, 4 // elem)        # sublane packing: f32->1, bf16->2, i8->4
    row_align = 8 * packing
    b_nc = max(1, target_bytes // (L * elem))
    if b_nc >= nc:
        b_nc = nc                       # one block covers every slice
    elif b_nc >= row_align:
        b_nc = (b_nc // row_align) * row_align
    else:
        b_nc = min(nc, 8)               # keep second-minor dim (8,128)-legal
    num_blocks = pl.cdiv(nc, b_nc)

    # 2-way split only on 2-TC chips (v7x); v5e/v6e keep a single split.
    n_splits = 2 if (_num_tensorcores() >= 2 and num_blocks >= 2) else 1
    blocks_per_split = pl.cdiv(num_blocks, n_splits)

    # Explicit VMEM budget from the real footprint (double-buffered input +
    # constant weights + output block + compiler headroom), capped at physical.
    vmem_need = (2 * b_nc * L * elem + 2 * 2 * L * 4 + 2 * 8 * 128 * 4
                 + (8 << 20))
    vmem_limit = int(min(max(vmem_need, 32 << 20), _vmem_capacity_bytes()))

    kernel = functools.partial(
        _tv_kernel,
        shift_h=(L - w) % L,
        shift_w=(L - 1) % L,
        nc=nc,
        blocks_per_split=blocks_per_split,
    )

    def x_index_map(s, j):
        # Clamp so a clamped/duplicate block never DMAs out of bounds; the
        # kernel masks it to a zero contribution via its *logical* index.
        b = s * blocks_per_split + j
        return (jnp.minimum(b, num_blocks - 1), 0)

    out = pl.pallas_call(
        kernel,
        out_shape=jax.ShapeDtypeStruct((n_splits, 8, 128), jnp.float32),
        grid_spec=pltpu.PrefetchScalarGridSpec(
            num_scalar_prefetch=0,
            grid=(n_splits, blocks_per_split),
            in_specs=[
                pl.BlockSpec((b_nc, L), x_index_map),
                pl.BlockSpec((2, L), lambda s, j: (0, 0)),
            ],
            out_specs=pl.BlockSpec((1, 8, 128), lambda s, j: (s, 0, 0)),
        ),
        compiler_params=pltpu.CompilerParams(
            dimension_semantics=("parallel", "arbitrary"),
            vmem_limit_bytes=vmem_limit),
        cost_estimate=pl.CostEstimate(
            flops=8 * nc * L,
            transcendentals=0,
            bytes_accessed=nc * L * elem + 2 * L * 4 + n_splits * 8 * 128 * 4),
    )(x2, jnp.asarray(w_arr))

    return jnp.sum(out[:, 0, 0])


def tv_loss_ref(x, tv_loss_weight=1.0):
    """Pure-JAX reference matching the PyTorch module."""
    n, c, h, w = x.shape
    count_h = c * (h - 1) * w
    count_w = c * h * (w - 1)
    xf = x.astype(jnp.float32)
    h_tv = jnp.sum((xf[:, :, 1:, :] - xf[:, :, :h - 1, :]) ** 2)
    w_tv = jnp.sum((xf[:, :, :, 1:] - xf[:, :, :, :w - 1]) ** 2)
    return tv_loss_weight * 2.0 * (h_tv / count_h + w_tv / count_w) / n


if __name__ == "__main__":
    key = jax.random.PRNGKey(0)
    x = jax.random.normal(key, (2, 4, 16, 16), dtype=jnp.float32)

    out = jax.block_until_ready(tv_loss(x, tv_loss_weight=1.0))
    ref = jax.block_until_ready(tv_loss_ref(x, tv_loss_weight=1.0))
    assert jnp.allclose(out, ref, rtol=1e-4, atol=1e-5), (out, ref)

    # Exercise the ragged-last-block (masked) path as well: nc % b_nc handled
    # entirely in-kernel, no host-side padding copy.
    x3 = jax.random.normal(jax.random.PRNGKey(1), (3, 3, 8, 24), jnp.float32)
    out3 = jax.block_until_ready(tv_loss(x3, tv_loss_weight=0.5))
    ref3 = jax.block_until_ready(tv_loss_ref(x3, tv_loss_weight=0.5))
    assert jnp.allclose(out3, ref3, rtol=1e-4, atol=1e-5), (out3, ref3)

    print("KERNEL_OK")
</pallas_src>

<mosaic_0001>
module attributes {stable_mosaic.version = 11 : i64} {
  func.func @_tv_kernel(%arg0: i32, %arg1: i32, %arg2: memref<8x256xf32, #tpu.memory_space<vmem>>, %arg3: memref<2x256xf32, #tpu.memory_space<vmem>>, %arg4: memref<1x8x128xf32, #tpu.memory_space<vmem>>) attributes {dimension_semantics = [#tpu.dimension_semantics<parallel>, #tpu.dimension_semantics<arbitrary>], iteration_bounds = array<i64: 1, 1>, scalar_prefetch = 0 : i64, scratch_operands = 0 : i64, tpu.core_type = #tpu.core_type<tc>, window_params = [{transform_indices = @transform_0, window_bounds = array<i64: 8, 256>}, {pipeline_mode = #tpu.pipeline_mode<synchronous>, transform_indices = @transform_1, window_bounds = array<i64: 2, 256>}, {transform_indices = @transform_2, window_bounds = array<i64: 1, 8, 128>}]} {
    %c1_i32 = arith.constant 1 : i32
    %0 = arith.muli %arg0, %c1_i32 : i32
    %1 = arith.addi %0, %arg1 : i32
    %c0_i32 = arith.constant 0 : i32
    %2 = arith.cmpi eq, %arg1, %c0_i32 : i32
    %3 = arith.extui %2 : i1 to i32
    %c0_i32_0 = arith.constant 0 : i32
    %4 = arith.cmpi ne, %3, %c0_i32_0 : i32
    scf.if %4 {
      %cst = arith.constant 0.000000e+00 : f32
      %27 = vector.broadcast %cst : f32 to vector<1x8x128xf32>
      %c0_10 = arith.constant 0 : index
      %c0_11 = arith.constant 0 : index
      %c0_12 = arith.constant 0 : index
      %28 = vector.load %arg4[%c0_10, %c0_11, %c0_12] : memref<1x8x128xf32, #tpu.memory_space<vmem>>, vector<1x8x128xf32>
      tpu.vector_store %arg4[%c0_10, %c0_11, %c0_12], %27 {strides = array<i32>} : memref<1x8x128xf32, #tpu.memory_space<vmem>>, vector<1x8x128xf32>,
    } else {
    }
    %c0 = arith.constant 0 : index
    %c0_1 = arith.constant 0 : index
    %5 = vector.load %arg2[%c0, %c0_1] : memref<8x256xf32, #tpu.memory_space<vmem>>, vector<8x256xf32>
    %c240_i32 = arith.constant 240 : i32
    %6 = tpu.dynamic_rotate %5 by %c240_i32 dim 1 : vector<8x256xf32>, i32 -> vector<8x256xf32>
    %c255_i32 = arith.constant 255 : i32
    %7 = tpu.dynamic_rotate %5 by %c255_i32 dim 1 : vector<8x256xf32>, i32 -> vector<8x256xf32>
    %8 = arith.subf %6, %5 : vector<8x256xf32>
    %9 = arith.subf %7, %5 : vector<8x256xf32>
    %10 = arith.mulf %8, %8 : vector<8x256xf32>
    %c0_2 = arith.constant 0 : index
    %c0_3 = arith.constant 0 : index
    %11 = vector.load %arg3[%c0_2, %c0_3] : memref<2x256xf32, #tpu.memory_space<vmem>>, vector<1x256xf32>
    %12 = vector.broadcast %11 : vector<1x256xf32> to vector<8x256xf32>
    %13 = arith.mulf %10, %12 : vector<8x256xf32>
    %14 = arith.mulf %9, %9 : vector<8x256xf32>
    %c1 = arith.constant 1 : index
    %c0_4 = arith.constant 0 : index
    %15 = vector.load %arg3[%c1, %c0_4] : memref<2x256xf32, #tpu.memory_space<vmem>>, vector<1x256xf32>
    %16 = vector.broadcast %15 : vector<1x256xf32> to vector<8x256xf32>
    %17 = arith.mulf %14, %16 : vector<8x256xf32>
    %18 = arith.addf %13, %17 : vector<8x256xf32>
    %c8_i32 = arith.constant 8 : i32
    %19 = arith.muli %1, %c8_i32 : i32
    %c8_i32_5 = arith.constant 8 : i32
    %20 = arith.subi %c8_i32_5, %19 : i32
    %c8_i32_6 = arith.constant 8 : i32
    %21 = arith.cmpi sge, %20, %c8_i32_6 : i32
    %22 = arith.extui %21 : i1 to i32
    %c0_i32_7 = arith.constant 0 : i32
    %23 = arith.cmpi ne, %22, %c0_i32_7 : i32
    scf.if %23 {
      %c0_10 = arith.constant 0 : index
      %c0_11 = arith.constant 0 : index
      %c0_12 = arith.constant 0 : index
      %27 = vector.load %arg4[%c0_10, %c0_11, %c0_12] : memref<1x8x128xf32, #tpu.memory_space<vmem>>, vector<1x8x128xf32>
      %28 = vector.shape_cast %18 : vector<8x256xf32> to vector<1x8x256xf32>
      %cst = arith.constant dense<0.000000e+00> : vector<1xf32>
      %29 = vector.multi_reduction <add>, %28, %cst [1, 2] : vector<1x8x256xf32> to vector<1xf32>
      %30 = vector.shape_cast %29 : vector<1xf32> to vector<1x1x1xf32>
      %31 = vector.extract %30[0, 0, 0] : f32 from vector<1x1x1xf32>
      %32 = vector.broadcast %31 : f32 to vector<1x8x128xf32>
      %33 = arith.addf %27, %32 : vector<1x8x128xf32>
      %c0_13 = arith.constant 0 : index
      %c0_14 = arith.constant 0 : index
      %c0_15 = arith.constant 0 : index
      %34 = vector.load %arg4[%c0_13, %c0_14, %c0_15] : memref<1x8x128xf32, #tpu.memory_space<vmem>>, vector<1x8x128xf32>
      tpu.vector_store %arg4[%c0_13, %c0_14, %c0_15], %33 {strides = array<i32>} : memref<1x8x128xf32, #tpu.memory_space<vmem>>, vector<1x8x128xf32>,
    } else {
    }
    %c8_i32_8 = arith.constant 8 : i32
    %24 = arith.cmpi slt, %20, %c8_i32_8 : i32
    %25 = arith.extui %24 : i1 to i32
    %c0_i32_9 = arith.constant 0 : i32
    %26 = arith.cmpi ne, %25, %c0_i32_9 : i32
    scf.if %26 {
      %27 = tpu.iota {dimensions = array<i32: 0>} : vector<8x256xi32>
      %c0_10 = arith.constant 0 : index
      %c0_11 = arith.constant 0 : index
      %c0_12 = arith.constant 0 : index
      %28 = vector.load %arg4[%c0_10, %c0_11, %c0_12] : memref<1x8x128xf32, #tpu.memory_space<vmem>>, vector<1x8x128xf32>
      %29 = vector.broadcast %20 : i32 to vector<8x256xi32>
      %30 = arith.cmpi slt, %27, %29 : vector<8x256xi32>
      %cst = arith.constant 0.000000e+00 : f32
      %31 = vector.broadcast %cst : f32 to vector<8x256xf32>
      %32 = arith.select %30, %18, %31 : vector<8x256xi1>, vector<8x256xf32>
      %33 = vector.shape_cast %32 : vector<8x256xf32> to vector<1x8x256xf32>
      %cst_13 = arith.constant dense<0.000000e+00> : vector<1xf32>
      %34 = vector.multi_reduction <add>, %33, %cst_13 [1, 2] : vector<1x8x256xf32> to vector<1xf32>
      %35 = vector.shape_cast %34 : vector<1xf32> to vector<1x1x1xf32>
      %36 = vector.extract %35[0, 0, 0] : f32 from vector<1x1x1xf32>
      %37 = vector.broadcast %36 : f32 to vector<1x8x128xf32>
      %38 = arith.addf %28, %37 : vector<1x8x128xf32>
      %c0_14 = arith.constant 0 : index
      %c0_15 = arith.constant 0 : index
      %c0_16 = arith.constant 0 : index
      %39 = vector.load %arg4[%c0_14, %c0_15, %c0_16] : memref<1x8x128xf32, #tpu.memory_space<vmem>>, vector<1x8x128xf32>
      tpu.vector_store %arg4[%c0_14, %c0_15, %c0_16], %38 {strides = array<i32>} : memref<1x8x128xf32, #tpu.memory_space<vmem>>, vector<1x8x128xf32>,
    } else {
    }
    return
  }
  func.func @transform_0(%arg0: i32, %arg1: i32) -> (i32, i32) {
    %c1_i32 = arith.constant 1 : i32
    %0 = arith.muli %arg0, %c1_i32 : i32
    %1 = arith.addi %0, %arg1 : i32
    %c0_i32 = arith.constant 0 : i32
    %2 = arith.minsi %1, %c0_i32 : i32
    %c0_i32_0 = arith.constant 0 : i32
    %c0_i32_1 = arith.constant 0 : i32
    return %2, %c0_i32_0 : i32, i32
  }
  func.func @transform_1(%arg0: i32, %arg1: i32) -> (i32, i32) {
    %c0_i32 = arith.constant 0 : i32
    %c0_i32_0 = arith.constant 0 : i32
    %c0_i32_1 = arith.constant 0 : i32
    return %c0_i32, %c0_i32_0 : i32, i32
  }
  func.func @transform_2(%arg0: i32, %arg1: i32) -> (i32, i32, i32) {
    %c0_i32 = arith.constant 0 : i32
    %c0_i32_0 = arith.constant 0 : i32
    %c0_i32_1 = arith.constant 0 : i32
    return %arg0, %c0_i32, %c0_i32_0 : i32, i32, i32
  }
}

</mosaic_0001>

<llo_original>
// kernel: tpu_custom_call.1
$region0: #{tpu_custom_call.1}
  #allocation0 [shape = 'u32[]', space=smem, size = 0x4, offset = 0x4, fixed_abs, tag = 'smem constant byte address 0x4 - core index']
  #allocation1 [shape = 'u32[144,128]{1,0:T(1,128)}', space=vmem, size = 0x12000, scoped, tag = 'internal scratch']
  %s0 = inlined_call_operand.hbm [shape: f32[8,256], index: 0, kind: input, shape index: {}]
  %s1 = inlined_call_operand.hbm [shape: f32[2,256], index: 1, kind: input, shape index: {}]
  %s2 = inlined_call_operand.hbm [shape: f32[1,8,128], index: 2, kind: output, shape index: {}]
  %s3 = sld [smem:[#allocation0]]
  $region38: #{tpu_custom_call.1} parent=0
    _
  %s5 = ssub.s32 1, %s3
  %s6 = scalar_select 0, %s5, %s3
  $region1: #{tpu_custom_call.1} parent=0
    #allocation2 [shape = 'u8[8192]{0}', space=vmem, size = 0x2000, scoped, tag = 'input window, operand 0, single buffered']
    #allocation3 [shape = 's32[1]{0}', space=sflag, size = 0x4, scoped, tag = 'scoped memory for tpu_custom_call.1']
    #allocation4 [shape = 's32[1]{0}', space=sflag, size = 0x4, scoped, tag = 'scoped memory for tpu_custom_call.1']
    #allocation5 [shape = 'u8[2048]{0}', space=vmem, size = 0x800, scoped, tag = 'input window, operand 1, single buffered']
    #allocation6 [shape = 's32[1]{0}', space=sflag, size = 0x4, scoped, tag = 'scoped memory for tpu_custom_call.1']
    #allocation7 [shape = 'u8[4096]{0}', space=vmem, size = 0x1000, scoped, tag = 'output window, operand 0, single buffered']
    %7 = vsyncpa [#allocation3], 0
    %8 = vsyncpa [#allocation6], 0
    %9 = vsyncpa [#allocation4], 0
    // Predicated region
    $region2: #{tpu_custom_call.1} parent=1 // pred_check
      _
    $region3: #{tpu_custom_call.1} parent=1 // pred_check_branch
      %11 = sbr.rel (0) target = $region5
    $region4: #{tpu_custom_call.1} parent=1 // pred_region
      %s12 = sadd.s32 0, 0
      %p13 = scmp.lt.s32.totalorder %s12, 0
      %s14 = scalar_select %p13, %s12, 0
      %s16 = ssub.s32 256, 256
      %17 = vsyncadd [#allocation3], %s16
      %s18 = smul.addr %s14, 2
      %s19 = smul.addr %s18, 128
      %s20 = scalar_lea.hbm %s0, %s19
      %s22 = sshll.u32 [#allocation2], 4
      %s23 = int_to_ptr.vmem [resolvable:$true] %s22
      %25 = dma.hbm_to_vmem [thread:$0]  %s20, 256, %s23, [#allocation3]
    $region5: #{tpu_custom_call.1} parent=1 // pred_fallthru
      _
    // Predicated region
    $region6: #{tpu_custom_call.1} parent=1 // pred_check
      _
    $region7: #{tpu_custom_call.1} parent=1 // pred_check_branch
      %27 = sbr.rel (0) target = $region9
    $region8: #{tpu_custom_call.1} parent=1 // pred_region
      %s29 = ssub.s32 64, 64
      %30 = vsyncadd [#allocation6], %s29
      %s32 = sshll.u32 [#allocation5], 4
      %s33 = int_to_ptr.vmem [resolvable:$true] %s32
      %35 = dma.hbm_to_vmem [thread:$0]  %s1, 64, %s33, [#allocation6]
    $region9: #{tpu_custom_call.1} parent=1 // pred_fallthru
      _
    // Predicated region
    $region10: #{tpu_custom_call.1} parent=1 // pred_check
      _
    $region11: #{tpu_custom_call.1} parent=1 // pred_check_branch
      %37 = sbr.rel (0) target = $region13
    $region12: #{tpu_custom_call.1} parent=1 // pred_region
      %38 = dma.done [#allocation3], 256
    $region13: #{tpu_custom_call.1} parent=1 // pred_fallthru
      _
    // Predicated region
    $region14: #{tpu_custom_call.1} parent=1 // pred_check
      _
    $region15: #{tpu_custom_call.1} parent=1 // pred_check_branch
      %40 = sbr.rel (0) target = $region17
    $region16: #{tpu_custom_call.1} parent=1 // pred_region
      %41 = dma.done [#allocation6], 64
    $region17: #{tpu_custom_call.1} parent=1 // pred_fallthru
      _
    %s42 = sadd.s32 0, 0
    %p43 = scmp.lt.s32.totalorder %s42, 0
    %s44 = scalar_select %p43, %s42, 0
    %s45 = sadd.s32 0, 0
    %p46 = scmp.eq.s32.totalorder 0, 0
    // Predicated region
    $region18: #{tpu_custom_call.1} parent=1 // pred_check
      %p47 = pneg %p46
    $region19: #{tpu_custom_call.1} parent=1 // pred_check_branch
      %49 = sbr.rel (%p47) target = $region21
    $region20: #{tpu_custom_call.1} parent=1 // pred_region
      %50 = vst [vmem:[#allocation7] sm:$0xff] 0.0
    $region21: #{tpu_custom_call.1} parent=1 // pred_fallthru
      _
    %v51 = vld [vmem:[#allocation2] sm:$0xff]
    %v52 = vld [vmem:[#allocation2 + $0x8] sm:$0xff]
    %53 = vrot.lane.b32.xlu0 %v51, 112
    %v54 = vpop.permute.xlu0 %53
    %55 = vrot.lane.b32.xlu0 %v52, 112
    %v56 = vpop.permute.xlu0 %55
    %v57 = vlaneseq
    %v58 = vand.u32 %v57, 127
    %vm59 = vcmp.lt.s32.totalorder %v58, 112
    %v60 = vsel %vm59, %v54, %v56
    %v61 = vsel %vm59, %v56, %v54
    %62 = vrot.lane.b32.xlu0 %v51, 127
    %v63 = vpop.permute.xlu0 %62
    %64 = vrot.lane.b32.xlu0 %v52, 127
    %v65 = vpop.permute.xlu0 %64
    %vm66 = vcmp.lt.s32.totalorder %v58, 127
    %v67 = vsel %vm66, %v63, %v65
    %v68 = vsel %vm66, %v65, %v63
    %v69 = vsub.f32 %v60, %v51
    %v70 = vsub.f32 %v61, %v52
    %v71 = vsub.f32 %v67, %v51
    %v72 = vsub.f32 %v68, %v52
    %v73 = vmul.f32 %v69, %v69
    %v74 = vmul.f32 %v70, %v70
    %v75 = vld [vmem:[#allocation5] ss:$2 sm:$0x3]
    %v77 = vlaneseq
    %v78 = vshrl.u32 %v77, 7
    %v79 = vsub.s32 0, %v78
    %v80 = vrot.slane %v75, %v79
    %v81 = vlaneseq
    %v82 = vshrl.u32 %v81, 7
    %v83 = vsub.s32 1, %v82
    %v84 = vrot.slane %v75, %v83
    %v87 = vmul.f32 %v73, %v80
    %v88 = vmul.f32 %v74, %v84
    %v89 = vmul.f32 %v71, %v71
    %v90 = vmul.f32 %v72, %v72
    %s91 = scalar_lea.vmem [#allocation5], 1
    %v92 = vld [vmem:[%s91] ss:$2 sm:$0x3]
    %v94 = vlaneseq
    %v95 = vshrl.u32 %v94, 7
    %v96 = vsub.s32 0, %v95
    %v97 = vrot.slane %v92, %v96
    %v98 = vlaneseq
    %v99 = vshrl.u32 %v98, 7
    %v100 = vsub.s32 1, %v99
    %v101 = vrot.slane %v92, %v100
    %v104 = vmul.f32 %v89, %v97
    %v105 = vmul.f32 %v90, %v101
    %v106 = vadd.f32 %v87, %v104
    %v107 = vadd.f32 %v88, %v105
    %s108 = smul.u32 %s45, 8
    %s109 = ssub.s32 8, %s108
    %p110 = scmp.ge.s32.totalorder %s109, 8
    // Predicated region
    $region22: #{tpu_custom_call.1} parent=1 // pred_check
      %p111 = pneg %p110
    $region23: #{tpu_custom_call.1} parent=1 // pred_check_branch
      %113 = sbr.rel (%p111) target = $region25
    $region24: #{tpu_custom_call.1} parent=1 // pred_region
      %v114 = vld [vmem:[#allocation7] sm:$0xff]
      %v115 = vadd.f32 %v106, %v107
      %116 = vadd.xlane.f32.xlu0 %v115
      %v117 = vpop.xlane.xlu0 %116
      %v118 = vrot.slane %v117, 4
      %v119 = vadd.f32 %v117, %v118
      %v120 = vrot.slane %v119, 2
      %v121 = vadd.f32 %v119, %v120
      %v122 = vrot.slane %v121, 1
      %v123 = vadd.f32 %v121, %v122
      %s124 = vtos %v123
      %v125 = vstv %s124
      %v126 = vadd.f32 %v114, %v125
      %127 = vst [vmem:[#allocation7] sm:$0xff] %v126
    $region25: #{tpu_custom_call.1} parent=1 // pred_fallthru
      _
    %p128 = scmp.lt.s32.totalorder %s109, 8
    // Predicated region
    $region26: #{tpu_custom_call.1} parent=1 // pred_check
      %p129 = pneg %p128
    $region27: #{tpu_custom_call.1} parent=1 // pred_check_branch
      %131 = sbr.rel (%p129) target = $region29
    $region28: #{tpu_custom_call.1} parent=1 // pred_region
      %v132 = vlaneseq
      %v133 = vshrl.u32 %v132, 7
      %v134 = vld [vmem:[#allocation7] sm:$0xff]
      %v135 = vstv %s109
      %vm136 = vcmp.lt.s32.totalorder %v133, %v135
      %v137 = vsel %vm136, %v106, 0.0
      %v138 = vsel %vm136, %v107, 0.0
      %v139 = vadd.f32 %v137, %v138
      %140 = vadd.xlane.f32.xlu0 %v139
      %v141 = vpop.xlane.xlu0 %140
      %v142 = vrot.slane %v141, 4
      %v143 = vadd.f32 %v141, %v142
      %v144 = vrot.slane %v143, 2
      %v145 = vadd.f32 %v143, %v144
      %v146 = vrot.slane %v145, 1
      %v147 = vadd.f32 %v145, %v146
      %s148 = vtos %v147
      %v149 = vstv %s148
      %v150 = vadd.f32 %v134, %v149
      %151 = vst [vmem:[#allocation7] sm:$0xff] %v150
    $region29: #{tpu_custom_call.1} parent=1 // pred_fallthru
      _
    // Predicated region
    $region30: #{tpu_custom_call.1} parent=1 // pred_check
      _
    $region31: #{tpu_custom_call.1} parent=1 // pred_check_branch
      %153 = sbr.rel (0) target = $region33
    $region32: #{tpu_custom_call.1} parent=1 // pred_region
      %s155 = ssub.s32 128, 128
      %156 = vsyncadd [#allocation4], %s155
      %s158 = sshll.u32 [#allocation7], 4
      %s159 = int_to_ptr.vmem [resolvable:$true] %s158
      %161 = dma.vmem_to_hbm [thread:$0]  %s159, 128, %s2, [#allocation4]
    $region33: #{tpu_custom_call.1} parent=1 // pred_fallthru
      _
    // Predicated region
    $region34: #{tpu_custom_call.1} parent=1 // pred_check
      _
    $region35: #{tpu_custom_call.1} parent=1 // pred_check_branch
      %163 = sbr.rel (0) target = $region37
    $region36: #{tpu_custom_call.1} parent=1 // pred_region
      %164 = dma.done [#allocation4], 128
    $region37: #{tpu_custom_call.1} parent=1 // pred_fallthru
      _
    %165 = vsyncpa [#allocation3], 1
    %166 = vsyncpa [#allocation6], 1
    %167 = vsyncpa [#allocation4], 1

</llo_original>
